<compile_context>
chip_gen: v7x
topology: tpu7x:2x2x1
jax: 0.10.0
libtpu: 0.0.40
codegen_flags: <defaults>
</compile_context>

<pallas_src>
import functools

import jax
import jax.numpy as jnp
from jax.experimental import pallas as pl
from jax.experimental.pallas import tpu as pltpu


def _round_up(x, m):
    return (x + m - 1) // m * m


# ----------------------------------------------------------------------------
# Kernel: all layers fused, weights resident, one (tm, F_pad) row tile per step
# ----------------------------------------------------------------------------
def _mlp_fused_kernel(x_ref, w_ref, b_ref, o_ref, *, n_layers, n_class):
    mxu_dtype = w_ref.dtype                    # bf16 on v6e/v7x, f32 otherwise
    h = x_ref[...]                             # (tm, F_pad), storage == compute dtype
    for k in range(n_layers):                  # K is small & static -> unrolled
        y = jnp.dot(h.astype(mxu_dtype), w_ref[k],
                    preferred_element_type=jnp.float32)       # MXU, f32 accumulation
        y = y + b_ref[k].astype(jnp.float32)   # (1, F_pad) broadcast; f32 epilogue
        if k < n_layers - 1:
            h = jnp.maximum(y, 0.0)            # ReLU (dropout = identity in eval mode)
        else:
            h = y                              # final logits (padded cols are 0)

    # log_softmax along the class axis; mask padded columns (>= n_class) to -inf.
    col = jax.lax.broadcasted_iota(jnp.int32, h.shape, 1)
    logits = jnp.where(col < n_class, h, -jnp.inf)
    m = jnp.max(logits, axis=-1, keepdims=True)
    shifted = logits - m
    lse = jnp.log(jnp.sum(jnp.exp(shifted), axis=-1, keepdims=True))
    o_ref[...] = (shifted - lse).astype(o_ref.dtype)


# ----------------------------------------------------------------------------
# Wrapper
# ----------------------------------------------------------------------------
def mlp_forward(x, params, K, *, block_rows=512, compute_dtype=None):
    """Forward pass matching MLP.forward (inference mode: dropout = identity).

    x: [N, n_feat]; params: list of (W[in,out], b[1,out]); returns [N, n_class]."""
    del K  # layer count is implied by params (built with the module's rule)
    n_layers = len(params)
    N, n_feat = x.shape
    n_class = params[-1][0].shape[1]
    out_dtype = x.dtype
    if compute_dtype is None:
        compute_dtype = x.dtype

    # Common lane-dense padded feature width (multiple of 128).
    dims = [n_feat] + [w.shape[1] for (w, _) in params]
    f_pad = _round_up(max(dims), 128)

    # Pack all layers into one VMEM-resident stack (zero padding keeps math exact:
    # pad activation columns stay 0 through every layer).
    w_stack = jnp.zeros((n_layers, f_pad, f_pad), compute_dtype)
    b_stack = jnp.zeros((n_layers, 1, f_pad), jnp.float32)
    for k, (w, b) in enumerate(params):
        fi, fo = w.shape
        w_stack = w_stack.at[k, :fi, :fo].set(w.astype(compute_dtype))
        b_stack = b_stack.at[k, :1, :fo].set(b.reshape(1, fo).astype(jnp.float32))

    # Row tiling (tm rows per grid step, sublane-aligned).
    tm = _round_up(min(block_rows, _round_up(N, 8)), 8)
    n_pad = _round_up(N, tm)
    x_p = jnp.zeros((n_pad, f_pad), compute_dtype).at[:N, :n_feat].set(
        x.astype(compute_dtype))

    kernel = functools.partial(_mlp_fused_kernel,
                               n_layers=n_layers, n_class=n_class)
    out_p = pl.pallas_call(
        kernel,
        out_shape=jax.ShapeDtypeStruct((n_pad, f_pad), out_dtype),
        grid_spec=pl.GridSpec(
            grid=(n_pad // tm,),
            in_specs=[
                pl.BlockSpec((tm, f_pad), lambda i: (i, 0)),                  # x row tile
                pl.BlockSpec((n_layers, f_pad, f_pad), lambda i: (0, 0, 0)),  # resident W
                pl.BlockSpec((n_layers, 1, f_pad), lambda i: (0, 0, 0)),      # resident b
            ],
            out_specs=pl.BlockSpec((tm, f_pad), lambda i: (i, 0)),            # lane-dense
        ),
        compiler_params=pltpu.CompilerParams(
            dimension_semantics=("parallel",)),   # shards row tiles across TCs on v7x
    )(x_p, w_stack, b_stack)

    return out_p[:N, :n_class]


# ----------------------------------------------------------------------------
# Parameter init mirroring the PyTorch layer shapes (weights stored [in, out])
# ----------------------------------------------------------------------------
def init_mlp_params(key, n_feat, n_hid, n_class, K, enable_bias=True,
                    dtype=jnp.float32):
    if K >= 2:
        dims = [(n_feat, n_hid)] + [(n_hid, n_hid)] * (K - 2) + [(n_hid, n_class)]
    else:
        dims = [(n_feat, n_class)]

    params = []
    for (fi, fo) in dims:
        key, kw, kb = jax.random.split(key, 3)
        bound = 1.0 / jnp.sqrt(fi)
        w = jax.random.uniform(kw, (fi, fo), dtype, -bound, bound)
        if enable_bias:
            b = jax.random.uniform(kb, (1, fo), dtype, -bound, bound)
        else:
            b = jnp.zeros((1, fo), dtype)
        params.append((w, b))
    return params


# ----------------------------------------------------------------------------
# Pure-JAX reference
# ----------------------------------------------------------------------------
def mlp_reference(x, params, K):
    if K >= 2:
        for k in range(K - 1):
            w, b = params[k]
            x = jnp.maximum(x @ w + b, 0.0)
        w, b = params[-1]
        x = x @ w + b
    else:
        w, b = params[0]
        x = x @ w + b
    return jax.nn.log_softmax(x, axis=1)


if __name__ == "__main__":
    key = jax.random.PRNGKey(0)

    # Small synthetic config: n_feat=32, n_hid=32, n_class=10, K=3, batch=64.
    N, n_feat, n_hid, n_class, K = 64, 32, 32, 10, 3
    enable_bias = True

    key, kx = jax.random.split(key)
    x = jax.random.normal(kx, (N, n_feat), jnp.float32)
    params = init_mlp_params(key, n_feat, n_hid, n_class, K, enable_bias)

    ref = mlp_reference(x, params, K)

    # f32 MXU path; block_rows=32 -> grid=(2,) exercises row tiling + "parallel" axis.
    out = jax.block_until_ready(mlp_forward(x, params, K, block_rows=32))
    assert out.shape == (N, n_class)
    assert jnp.allclose(out, ref, atol=1e-5, rtol=1e-5), "f32 mismatch vs reference"

    # bf16-into-MXU path (what you'd run on v6e/v7x); f32 accumulation + f32 epilogue.
    out_bf16 = jax.block_until_ready(
        mlp_forward(x, params, K, block_rows=32, compute_dtype=jnp.bfloat16))
    assert out_bf16.shape == (N, n_class)
    assert jnp.allclose(out_bf16, ref, atol=1e-1, rtol=1e-1), "bf16 mismatch vs reference"

    print("KERNEL_OK")
</pallas_src>

<mosaic_0001>
module attributes {stable_mosaic.version = 11 : i64} {
  func.func @_mlp_fused_kernel(%arg0: i32, %arg1: memref<32x128xf32, #tpu.memory_space<vmem>>, %arg2: memref<3x128x128xf32, #tpu.memory_space<vmem>>, %arg3: memref<3x1x128xf32, #tpu.memory_space<vmem>>, %arg4: memref<32x128xf32, #tpu.memory_space<vmem>>) attributes {dimension_semantics = [#tpu.dimension_semantics<parallel>], iteration_bounds = array<i64: 2>, scalar_prefetch = 0 : i64, scratch_operands = 0 : i64, tpu.core_type = #tpu.core_type<tc>, window_params = [{transform_indices = @transform_0, window_bounds = array<i64: 32, 128>}, {pipeline_mode = #tpu.pipeline_mode<synchronous>, transform_indices = @transform_1, window_bounds = array<i64: 3, 128, 128>}, {pipeline_mode = #tpu.pipeline_mode<synchronous>, transform_indices = @transform_2, window_bounds = array<i64: 3, 1, 128>}, {transform_indices = @transform_3, window_bounds = array<i64: 32, 128>}]} {
    %c0 = arith.constant 0 : index
    %c0_0 = arith.constant 0 : index
    %0 = vector.load %arg1[%c0, %c0_0] : memref<32x128xf32, #tpu.memory_space<vmem>>, vector<32x128xf32>
    %c0_1 = arith.constant 0 : index
    %c0_2 = arith.constant 0 : index
    %c0_3 = arith.constant 0 : index
    %1 = vector.load %arg2[%c0_1, %c0_2, %c0_3] : memref<3x128x128xf32, #tpu.memory_space<vmem>>, vector<1x128x128xf32>
    %2 = vector.shape_cast %1 : vector<1x128x128xf32> to vector<128x128xf32>
    %cst = arith.constant dense<0.000000e+00> : vector<32x128xf32>
    %3 = tpu.matmul %0, %2, %cst {dimension_numbers = #tpu.dot_dimension_numbers<[1], [0], [0], [1], [0, 0, 1, 1], [], []>} : vector<32x128xf32>, vector<128x128xf32>, vector<32x128xf32> -> vector<32x128xf32>
    %c0_4 = arith.constant 0 : index
    %c0_5 = arith.constant 0 : index
    %c0_6 = arith.constant 0 : index
    %4 = vector.load %arg3[%c0_4, %c0_5, %c0_6] : memref<3x1x128xf32, #tpu.memory_space<vmem>>, vector<1x1x128xf32>
    %5 = vector.shape_cast %4 : vector<1x1x128xf32> to vector<1x128xf32>
    %6 = vector.broadcast %5 : vector<1x128xf32> to vector<32x128xf32>
    %7 = arith.addf %3, %6 : vector<32x128xf32>
    %cst_7 = arith.constant 0.000000e+00 : f32
    %8 = vector.broadcast %cst_7 : f32 to vector<32x128xf32>
    %9 = arith.maximumf %7, %8 : vector<32x128xf32>
    %c1 = arith.constant 1 : index
    %c0_8 = arith.constant 0 : index
    %c0_9 = arith.constant 0 : index
    %10 = vector.load %arg2[%c1, %c0_8, %c0_9] : memref<3x128x128xf32, #tpu.memory_space<vmem>>, vector<1x128x128xf32>
    %11 = vector.shape_cast %10 : vector<1x128x128xf32> to vector<128x128xf32>
    %cst_10 = arith.constant dense<0.000000e+00> : vector<32x128xf32>
    %12 = tpu.matmul %9, %11, %cst_10 {dimension_numbers = #tpu.dot_dimension_numbers<[1], [0], [0], [1], [0, 0, 1, 1], [], []>} : vector<32x128xf32>, vector<128x128xf32>, vector<32x128xf32> -> vector<32x128xf32>
    %c1_11 = arith.constant 1 : index
    %c0_12 = arith.constant 0 : index
    %c0_13 = arith.constant 0 : index
    %13 = vector.load %arg3[%c1_11, %c0_12, %c0_13] : memref<3x1x128xf32, #tpu.memory_space<vmem>>, vector<1x1x128xf32>
    %14 = vector.shape_cast %13 : vector<1x1x128xf32> to vector<1x128xf32>
    %15 = vector.broadcast %14 : vector<1x128xf32> to vector<32x128xf32>
    %16 = arith.addf %12, %15 : vector<32x128xf32>
    %cst_14 = arith.constant 0.000000e+00 : f32
    %17 = vector.broadcast %cst_14 : f32 to vector<32x128xf32>
    %18 = arith.maximumf %16, %17 : vector<32x128xf32>
    %c2 = arith.constant 2 : index
    %c0_15 = arith.constant 0 : index
    %c0_16 = arith.constant 0 : index
    %19 = vector.load %arg2[%c2, %c0_15, %c0_16] : memref<3x128x128xf32, #tpu.memory_space<vmem>>, vector<1x128x128xf32>
    %20 = vector.shape_cast %19 : vector<1x128x128xf32> to vector<128x128xf32>
    %cst_17 = arith.constant dense<0.000000e+00> : vector<32x128xf32>
    %21 = tpu.matmul %18, %20, %cst_17 {dimension_numbers = #tpu.dot_dimension_numbers<[1], [0], [0], [1], [0, 0, 1, 1], [], []>} : vector<32x128xf32>, vector<128x128xf32>, vector<32x128xf32> -> vector<32x128xf32>
    %c2_18 = arith.constant 2 : index
    %c0_19 = arith.constant 0 : index
    %c0_20 = arith.constant 0 : index
    %22 = vector.load %arg3[%c2_18, %c0_19, %c0_20] : memref<3x1x128xf32, #tpu.memory_space<vmem>>, vector<1x1x128xf32>
    %23 = vector.shape_cast %22 : vector<1x1x128xf32> to vector<1x128xf32>
    %24 = vector.broadcast %23 : vector<1x128xf32> to vector<32x128xf32>
    %25 = arith.addf %21, %24 : vector<32x128xf32>
    %26 = tpu.iota {dimensions = array<i32: 1>} : vector<32x128xi32>
    %c10_i32 = arith.constant 10 : i32
    %27 = vector.broadcast %c10_i32 : i32 to vector<32x128xi32>
    %28 = arith.cmpi slt, %26, %27 : vector<32x128xi32>
    %cst_21 = arith.constant 0xFF800000 : f32
    %29 = vector.broadcast %cst_21 : f32 to vector<32x128xf32>
    %30 = arith.select %28, %25, %29 : vector<32x128xi1>, vector<32x128xf32>
    %cst_22 = arith.constant dense<0xFF800000> : vector<32xf32>
    %31 = vector.multi_reduction <maximumf>, %30, %cst_22 [1] : vector<32x128xf32> to vector<32xf32>
    %32 = vector.shape_cast %31 : vector<32xf32> to vector<32x1xf32>
    %33 = vector.broadcast %32 : vector<32x1xf32> to vector<32x128xf32>
    %34 = arith.subf %30, %33 : vector<32x128xf32>
    %35 = math.exp %34 : vector<32x128xf32>
    %cst_23 = arith.constant dense<0.000000e+00> : vector<32xf32>
    %36 = vector.multi_reduction <add>, %35, %cst_23 [1] : vector<32x128xf32> to vector<32xf32>
    %37 = vector.shape_cast %36 : vector<32xf32> to vector<32x1xf32>
    %38 = math.log %37 : vector<32x1xf32>
    %39 = vector.broadcast %38 : vector<32x1xf32> to vector<32x128xf32>
    %40 = arith.subf %34, %39 : vector<32x128xf32>
    %c0_24 = arith.constant 0 : index
    %c0_25 = arith.constant 0 : index
    %41 = vector.load %arg4[%c0_24, %c0_25] : memref<32x128xf32, #tpu.memory_space<vmem>>, vector<32x128xf32>
    tpu.vector_store %arg4[%c0_24, %c0_25], %40 {strides = array<i32>} : memref<32x128xf32, #tpu.memory_space<vmem>>, vector<32x128xf32>,
    return
  }
  func.func @transform_0(%arg0: i32) -> (i32, i32) {
    %c0_i32 = arith.constant 0 : i32
    %c0_i32_0 = arith.constant 0 : i32
    return %arg0, %c0_i32 : i32, i32
  }
  func.func @transform_1(%arg0: i32) -> (i32, i32, i32) {
    %c0_i32 = arith.constant 0 : i32
    %c0_i32_0 = arith.constant 0 : i32
    %c0_i32_1 = arith.constant 0 : i32
    %c0_i32_2 = arith.constant 0 : i32
    return %c0_i32, %c0_i32_0, %c0_i32_1 : i32, i32, i32
  }
  func.func @transform_2(%arg0: i32) -> (i32, i32, i32) {
    %c0_i32 = arith.constant 0 : i32
    %c0_i32_0 = arith.constant 0 : i32
    %c0_i32_1 = arith.constant 0 : i32
    %c0_i32_2 = arith.constant 0 : i32
    return %c0_i32, %c0_i32_0, %c0_i32_1 : i32, i32, i32
  }
  func.func @transform_3(%arg0: i32) -> (i32, i32) {
    %c0_i32 = arith.constant 0 : i32
    %c0_i32_0 = arith.constant 0 : i32
    return %arg0, %c0_i32 : i32, i32
  }
}

</mosaic_0001>

<llo_original>
// kernel: tpu_custom_call.1
$region0: #{tpu_custom_call.1}
  #allocation0 [shape = 'u32[]', space=smem, size = 0x4, offset = 0x4, fixed_abs, tag = 'smem constant byte address 0x4 - core index']
  #allocation1 [shape = 'u32[144,128]{1,0:T(1,128)}', space=vmem, size = 0x12000, scoped, tag = 'internal scratch']
  %s0 = inlined_call_operand.hbm [shape: f32[64,128], index: 0, kind: input, shape index: {}]
  %s1 = inlined_call_operand.hbm [shape: f32[3,128,128], index: 1, kind: input, shape index: {}]
  %s2 = inlined_call_operand.vmem [shape: f32[3,1,128], index: 2, kind: input, shape index: {}]
  %s3 = inlined_call_operand.hbm [shape: f32[64,128], index: 3, kind: output, shape index: {}]
  %s4 = sld [smem:[#allocation0]]
  $region53: #{tpu_custom_call.1} parent=0
    _
  %s6 = ssub.s32 1, %s4
  %s7 = scalar_select 0, %s6, %s4
  $region1: #{tpu_custom_call.1} parent=0
    #allocation2 [shape = 'u8[32768]{0}', space=vmem, size = 0x8000, scoped, tag = 'input window, operand 0']
    #allocation3 [shape = 's32[2]{0}', space=sflag, size = 0x8, scoped, tag = 'scoped memory for tpu_custom_call.1']
    #allocation4 [shape = 's32[2]{0}', space=sflag, size = 0x8, scoped, tag = 'scoped memory for tpu_custom_call.1']
    #allocation5 [shape = 'u8[196608]{0}', space=vmem, size = 0x30000, scoped, tag = 'input window, operand 1, single buffered']
    #allocation6 [shape = 's32[1]{0}', space=sflag, size = 0x4, scoped, tag = 'scoped memory for tpu_custom_call.1']
    #allocation7 [shape = 'u8[32768]{0}', space=vmem, size = 0x8000, scoped, tag = 'output window, operand 0']
    %8 = vsyncpa [#allocation3], 0
    %s9 = scalar_lea.sflag [#allocation3], 1
    %10 = vsyncpa %s9, 0
    %11 = vsyncpa [#allocation6], 0
    %12 = vsyncpa [#allocation4], 0
    %s13 = scalar_lea.sflag [#allocation4], 1
    %14 = vsyncpa %s13, 0
    loop: start=0, step=1, limit=4
    $region2: #{tpu_custom_call.1} parent=1 // loop_pre_header
      _
    $region3: #{tpu_custom_call.1} parent=1 // loop_header
      %s16 = sphi 0, %s20
      %p17 = scmp.ge.s32.totalorder %s16, 4
      %s26 = sphi 0, %s28
      %s29 = sphi 0, %s26
      %s30 = sphi 0, %s29
      %s46 = sphi 0, %s30
      %s50 = sphi 0, %s50
      %s52 = sphi 0, %s50
      %s53 = sphi 0, %s52
      %s67 = sphi 0, %s53
      %s71 = sphi 0, %s71
      %s73 = sphi 0, %s71
      %s74 = sphi 0, %s73
      %s88 = sphi 0, %s74
      %s94 = sphi 0, %s96
      %s97 = sphi 0, %s94
      %s98 = sphi 0, %s97
      %s114 = sphi 0, %s98
    $region4: #{tpu_custom_call.1} parent=1 // loop_header_branch
      %19 = sbr.rel (%p17) target = $region8
    $region5: #{tpu_custom_call.1} parent=1 // loop_body
      %s21 = ssub.s32 %s16, 1
      %s22 = ssub.s32 %s16, 2
      %s23 = sadd.s32 %s16, 1
      %s24 = ssub.s32 %s16, %s23
      %p25 = scmp.eq.s32.totalorder %s24, 0
      %s27 = sadd.s32 %s26, 1
      %s28 = scalar_select %p25, %s26, %s27
      %p31 = pneg %p25
      %p32 = scmp.eq.s32.totalorder %s16, 1
      %p33 = por %p31, %p32
      %p34 = scmp.ne.s32.totalorder %s26, %s29
      %p35 = scmp.eq.s32.totalorder %s16, 0
      %p36 = por %p34, %p35
      %p37 = scmp.ne.s32.totalorder %s26, %s29
      %p38 = scmp.eq.s32.totalorder %s21, 1
      %p39 = por %p37, %p38
      %p40 = scmp.ne.s32.totalorder %s29, %s30
      %p41 = scmp.eq.s32.totalorder %s21, 0
      %p42 = por %p40, %p41
      %p43 = scmp.ne.s32.totalorder %s29, %s30
      %p44 = scmp.eq.s32.totalorder %s22, 1
      %p45 = por %p43, %p44
      %p47 = scmp.ne.s32.totalorder %s30, %s46
      %p48 = scmp.eq.s32.totalorder %s22, 0
      %p49 = por %p47, %p48
      %s51 = sadd.s32 %s50, 1
      %p54 = scmp.eq.s32.totalorder %s16, 1
      %p55 = scmp.ne.s32.totalorder %s50, %s52
      %p56 = scmp.eq.s32.totalorder %s16, 0
      %p57 = por %p55, %p56
      %p58 = scmp.ne.s32.totalorder %s50, %s52
      %p59 = scmp.eq.s32.totalorder %s21, 1
      %p60 = por %p58, %p59
      %p61 = scmp.ne.s32.totalorder %s52, %s53
      %p62 = scmp.eq.s32.totalorder %s21, 0
      %p63 = por %p61, %p62
      %p64 = scmp.ne.s32.totalorder %s52, %s53
      %p65 = scmp.eq.s32.totalorder %s22, 1
      %p66 = por %p64, %p65
      %p68 = scmp.ne.s32.totalorder %s53, %s67
      %p69 = scmp.eq.s32.totalorder %s22, 0
      %p70 = por %p68, %p69
      %s72 = sadd.s32 %s71, 1
      %p75 = scmp.eq.s32.totalorder %s16, 1
      %p76 = scmp.ne.s32.totalorder %s71, %s73
      %p77 = scmp.eq.s32.totalorder %s16, 0
      %p78 = por %p76, %p77
      %p79 = scmp.ne.s32.totalorder %s71, %s73
      %p80 = scmp.eq.s32.totalorder %s21, 1
      %p81 = por %p79, %p80
      %p82 = scmp.ne.s32.totalorder %s73, %s74
      %p83 = scmp.eq.s32.totalorder %s21, 0
      %p84 = por %p82, %p83
      %p85 = scmp.ne.s32.totalorder %s73, %s74
      %p86 = scmp.eq.s32.totalorder %s22, 1
      %p87 = por %p85, %p86
      %p89 = scmp.ne.s32.totalorder %s74, %s88
      %p90 = scmp.eq.s32.totalorder %s22, 0
      %p91 = por %p89, %p90
      %s92 = ssub.s32 %s16, %s23
      %p93 = scmp.eq.s32.totalorder %s92, 0
      %s95 = sadd.s32 %s94, 1
      %s96 = scalar_select %p93, %s94, %s95
      %p99 = pneg %p93
      %p100 = scmp.eq.s32.totalorder %s16, 1
      %p101 = por %p99, %p100
      %p102 = scmp.ne.s32.totalorder %s94, %s97
      %p103 = scmp.eq.s32.totalorder %s16, 0
      %p104 = por %p102, %p103
      %p105 = scmp.ne.s32.totalorder %s94, %s97
      %p106 = scmp.eq.s32.totalorder %s21, 1
      %p107 = por %p105, %p106
      %p108 = scmp.ne.s32.totalorder %s97, %s98
      %p109 = scmp.eq.s32.totalorder %s21, 0
      %p110 = por %p108, %p109
      %p111 = scmp.ne.s32.totalorder %s97, %s98
      %p112 = scmp.eq.s32.totalorder %s22, 1
      %p113 = por %p111, %p112
      %p115 = scmp.ne.s32.totalorder %s98, %s114
      %p116 = scmp.eq.s32.totalorder %s22, 0
      %p117 = por %p115, %p116
      %p118 = scmp.le.s32.totalorder 1, %s16
      %p119 = scmp.lt.s32.totalorder %s16, 3
      %p120 = pnand %p118, %p119
      %p121 = pneg %p120
      // Predicated region
      $region9: #{tpu_custom_call.1} parent=5 // pred_check
        _
      $region10: #{tpu_custom_call.1} parent=5 // pred_check_branch
        %123 = sbr.rel (%p120) target = $region12
      $region11: #{tpu_custom_call.1} parent=5 // pred_region
        %s124 = ssub.s32 %s16, 1
        // Predicated region
        $region13: #{tpu_custom_call.1} parent=11 // pred_check
          %p125 = pneg %p63
        $region14: #{tpu_custom_call.1} parent=11 // pred_check_branch
          %127 = sbr.rel (%p125) target = $region16
        $region15: #{tpu_custom_call.1} parent=11 // pred_region
          %s129 = ssub.s32 6144, 6144
          %130 = vsyncadd [#allocation6], %s129
          %s131 = sshll.u32 [#allocation5], 4
          %s132 = int_to_ptr.vmem [resolvable:$true] %s131
          %137 = dma.hbm_to_vmem [thread:$0]  %s1, 6144, %s132, [#allocation6], 128, 128, 8
        $region16: #{tpu_custom_call.1} parent=11 // pred_fallthru
          _
        // Predicated region
        $region17: #{tpu_custom_call.1} parent=11 // pred_check
          %p138 = pneg %p84
        $region18: #{tpu_custom_call.1} parent=11 // pred_check_branch
          %140 = sbr.rel (%p138) target = $region20
        $region19: #{tpu_custom_call.1} parent=11 // pred_region
          _
        $region20: #{tpu_custom_call.1} parent=11 // pred_fallthru
          _
      $region12: #{tpu_custom_call.1} parent=5 // pred_fallthru
        _
      %p141 = scmp.lt.s32.totalorder %s16, 2
      // Predicated region
      $region21: #{tpu_custom_call.1} parent=5 // pred_check
        %p142 = pneg %p141
      $region22: #{tpu_custom_call.1} parent=5 // pred_check_branch
        %144 = sbr.rel (%p142) target = $region24
      $region23: #{tpu_custom_call.1} parent=5 // pred_region
        // Predicated region
        $region25: #{tpu_custom_call.1} parent=23 // pred_check
          %p145 = pneg %p36
        $region26: #{tpu_custom_call.1} parent=23 // pred_check_branch
          %147 = sbr.rel (%p145) target = $region28
        $region27: #{tpu_custom_call.1} parent=23 // pred_region
          %s148 = sand.u32 %s26, 1
          %s149 = scalar_lea.sflag [#allocation3], %s148
          %s150 = sand.u32 %s26, 1
          %s151 = smul.addr %s150, 32
          %s152 = scalar_lea.vmem [#allocation2], %s151
          %s153 = smul.u32 4, %s16
          %s155 = ssub.s32 512, 512
          %156 = vsyncadd %s149, %s155
          %s157 = smul.addr %s153, 128
          %s158 = scalar_lea.hbm %s0, %s157
          %s159 = sshll.u32 %s152, 4
          %s160 = int_to_ptr.vmem [resolvable:$true] %s159
          %165 = dma.hbm_to_vmem [thread:$0]  %s158, 512, %s160, %s149, 128, 128, 8
        $region28: #{tpu_custom_call.1} parent=23 // pred_fallthru
          _
      $region24: #{tpu_custom_call.1} parent=5 // pred_fallthru
        _
      %p166 = scmp.le.s32.totalorder 1, %s16
      %p167 = scmp.lt.s32.totalorder %s16, 3
      %p168 = pnand %p166, %p167
      %p169 = pneg %p168
      // Predicated region
      $region29: #{tpu_custom_call.1} parent=5 // pred_check
        _
      $region30: #{tpu_custom_call.1} parent=5 // pred_check_branch
        %171 = sbr.rel (%p168) target = $region32
      $region31: #{tpu_custom_call.1} parent=5 // pred_region
        %s172 = ssub.s32 %s16, 1
        %s173 = sand.u32 %s29, 1
        %s174 = scalar_lea.sflag [#allocation3], %s173
        %s175 = sand.u32 %s29, 1
        %s176 = smul.addr %s175, 32
        %s177 = scalar_lea.vmem [#allocation2], %s176
        // Predicated region
        $region33: #{tpu_custom_call.1} parent=31 // pred_check
          %p178 = pneg %p42
        $region34: #{tpu_custom_call.1} parent=31 // pred_check_branch
          %180 = sbr.rel (%p178) target = $region36
        $region35: #{tpu_custom_call.1} parent=31 // pred_region
          %181 = dma.done %s174, 512
        $region36: #{tpu_custom_call.1} parent=31 // pred_fallthru
          _
        // Predicated region
        $region37: #{tpu_custom_call.1} parent=31 // pred_check
          %p182 = pneg %p63
        $region38: #{tpu_custom_call.1} parent=31 // pred_check_branch
          %184 = sbr.rel (%p182) target = $region40
        $region39: #{tpu_custom_call.1} parent=31 // pred_region
          %185 = dma.done [#allocation6], 6144
        $region40: #{tpu_custom_call.1} parent=31 // pred_fallthru
          _
        %s186 = sand.u32 %s29, 1
        %s187 = scalar_lea.sflag [#allocation3], %s186
        %s188 = sand.u32 %s29, 1
        %s189 = smul.addr %s188, 32
        %s190 = scalar_lea.vmem [#allocation2], %s189
        %p191 = pneg %p42
        %p192 = pneg %p39
        %p193 = pneg %p63
        %p194 = pneg %p60
        %p195 = pneg %p84
        %p196 = pneg %p81
        %p197 = pneg %p110
        %p198 = pneg %p107
        %s199 = sand.u32 %s97, 1
        %s200 = scalar_lea.sflag [#allocation4], %s199
        %s201 = sand.u32 %s97, 1
        %s202 = smul.addr %s201, 32
        %s203 = scalar_lea.vmem [#allocation7], %s202
        %s204 = smul.u32 4, %s21
        %s205 = smul.u32 4, %s21
        %v206 = vld [vmem:[%s177] sm:$0xff]
        %v207 = vld [vmem:[%s177 + $0x8] sm:$0xff]
        %v208 = vld [vmem:[%s177 + $0x10] sm:$0xff]
        %v209 = vld [vmem:[%s177 + $0x18] sm:$0xff]
        %v210 = vld [vmem:[#allocation5] sm:$0xff]
        %v211 = vld [vmem:[#allocation5 + $0x8] sm:$0xff]
        %v212 = vld [vmem:[#allocation5 + $0x10] sm:$0xff]
        %v213 = vld [vmem:[#allocation5 + $0x18] sm:$0xff]
        %v214 = vld [vmem:[#allocation5 + $0x20] sm:$0xff]
        %v215 = vld [vmem:[#allocation5 + $0x28] sm:$0xff]
        %v216 = vld [vmem:[#allocation5 + $0x30] sm:$0xff]
        %v217 = vld [vmem:[#allocation5 + $0x38] sm:$0xff]
        %v218 = vld [vmem:[#allocation5 + $0x40] sm:$0xff]
        %v219 = vld [vmem:[#allocation5 + $0x48] sm:$0xff]
        %v220 = vld [vmem:[#allocation5 + $0x50] sm:$0xff]
        %v221 = vld [vmem:[#allocation5 + $0x58] sm:$0xff]
        %v222 = vld [vmem:[#allocation5 + $0x60] sm:$0xff]
        %v223 = vld [vmem:[#allocation5 + $0x68] sm:$0xff]
        %v224 = vld [vmem:[#allocation5 + $0x70] sm:$0xff]
        %v225 = vld [vmem:[#allocation5 + $0x78] sm:$0xff]
        %v226 = vld [vmem:[%s2] sm:$0x1]
        %v228 = vlaneseq
        %v229 = vshrl.u32 %v228, 7
        %v230 = vsub.s32 0, %v229
        %v231 = vrot.slane %v226, %v230
        %233 = vmatprep.subr.mxu0 0.0
        %234 = vmatpush1.msra.mxu0 %v210
        %235 = vmatprep.subr.mxu0 0.0
        %236 = vmatpush1.msra.mxu0 %v211
        %237 = vmatprep.subr.mxu0 0.0
        %238 = vmatpush1.msra.mxu0 %v212
        %239 = vmatprep.subr.mxu0 0.0
        %240 = vmatpush1.msra.mxu0 %v213
        %241 = vmatprep.subr.mxu0 0.0
        %242 = vmatpush1.msra.mxu0 %v214
        %243 = vmatprep.subr.mxu0 0.0
        %244 = vmatpush1.msra.mxu0 %v215
        %245 = vmatprep.subr.mxu0 0.0
        %246 = vmatpush1.msra.mxu0 %v216
        %247 = vmatprep.subr.mxu0 0.0
        %248 = vmatpush1.msra.mxu0 %v217
        %249 = vmatprep.subr.mxu0 0.0
        %250 = vmatpush1.msra.mxu0 %v218
        %251 = vmatprep.subr.mxu0 0.0
        %252 = vmatpush1.msra.mxu0 %v219
        %253 = vmatprep.subr.mxu0 0.0
        %254 = vmatpush1.msra.mxu0 %v220
        %255 = vmatprep.subr.mxu0 0.0
        %256 = vmatpush1.msra.mxu0 %v221
        %257 = vmatprep.subr.mxu0 0.0
        %258 = vmatpush1.msra.mxu0 %v222
        %259 = vmatprep.subr.mxu0 0.0
        %260 = vmatpush1.msra.mxu0 %v223
        %261 = vmatprep.subr.mxu0 0.0
        %262 = vmatpush1.msra.mxu0 %v224
        %263 = vmatprep.subr.mxu0 0.0
        %264 = vmatpush1.msra.mxu0 %v225
        %265 = vmatprep.subr.mxu0 0.0
        %266 = vmatpush1.msra.mxu0 0.0
        %267 = vmatprep.subr.mxu0 0.0
        %268 = vmatpush1.msra.mxu0 0.0
        %269 = vmatprep.subr.mxu0 0.0
        %270 = vmatpush1.msra.mxu0 0.0
        %271 = vmatprep.subr.mxu0 0.0
        %272 = vmatpush1.msra.mxu0 0.0
        %273 = vmatprep.subr.mxu0 0.0
        %274 = vmatpush1.msra.mxu0 0.0
        %275 = vmatprep.subr.mxu0 0.0
        %276 = vmatpush1.msra.mxu0 0.0
        %277 = vmatprep.subr.mxu0 0.0
        %278 = vmatpush1.msra.mxu0 0.0
        %279 = vmatprep.subr.mxu0 0.0
        %280 = vmatpush1.msra.mxu0 0.0
        %281 = vmatprep.subr.mxu0 0.0
        %282 = vmatpush1.msra.mxu0 0.0
        %283 = vmatprep.subr.mxu0 0.0
        %284 = vmatpush1.msra.mxu0 0.0
        %285 = vmatprep.subr.mxu0 0.0
        %286 = vmatpush1.msra.mxu0 0.0
        %287 = vmatprep.subr.mxu0 0.0
        %288 = vmatpush1.msra.mxu0 0.0
        %289 = vmatprep.subr.mxu0 0.0
        %290 = vmatpush1.msra.mxu0 0.0
        %291 = vmatprep.subr.mxu0 0.0
        %292 = vmatpush1.msra.mxu0 0.0
        %293 = vmatprep.subr.mxu0 0.0
        %294 = vmatpush1.msra.mxu0 0.0
        %295 = vmatprep.subr.mxu0 0.0
        %296 = vmatpush1.msra.mxu0 0.0
        %297 = vmatprep.mubr.f32.mxu0 0.0
        %298 = vmatmul.mubr.f32.gmra.mrb[0].mxu0 %v206
        %v299 = vpop.f32.mrb[0].mxu0
        %v300 = vadd.f32 %v231, %v299
        %v301 = vpop.f32.mrb[0].mxu0
        %302 = vmatprep.mubr.f32.mxu0 0.0
        %303 = vmatmul.mubr.f32.gmra.mrb[0].mxu0 %v207
        %v304 = vpop.f32.mrb[0].mxu0
        %v305 = vadd.f32 %v231, %v304
        %v306 = vpop.f32.mrb[0].mxu0
        %307 = vmatprep.mubr.f32.mxu0 0.0
        %308 = vmatmul.mubr.f32.gmra.mrb[0].mxu0 %v208
        %v309 = vpop.f32.mrb[0].mxu0
        %v310 = vadd.f32 %v231, %v309
        %v311 = vpop.f32.mrb[0].mxu0
        %312 = vmatprep.mubr.f32.mxu0 0.0
        %313 = vmatmul.mubr.f32.gmra.mrb[0].mxu0 %v209
        %v314 = vpop.f32.mrb[0].mxu0
        %v315 = vadd.f32 %v231, %v314
        %v316 = vpop.f32.mrb[0].mxu0
        %317 = vdwg.mxu0
        %v318 = vmax.f32 %v300, 0.0
        %v319 = vmax.f32 %v305, 0.0
        %v320 = vmax.f32 %v310, 0.0
        %v321 = vmax.f32 %v315, 0.0
        %s322 = scalar_lea.vmem [#allocation5], 128
        %v323 = vld [vmem:[%s322] sm:$0xff]
        %v324 = vld [vmem:[%s322 + $0x8] sm:$0xff]
        %v325 = vld [vmem:[%s322 + $0x10] sm:$0xff]
        %v326 = vld [vmem:[%s322 + $0x18] sm:$0xff]
        %v327 = vld [vmem:[%s322 + $0x20] sm:$0xff]
        %v328 = vld [vmem:[%s322 + $0x28] sm:$0xff]
        %v329 = vld [vmem:[%s322 + $0x30] sm:$0xff]
        %v330 = vld [vmem:[%s322 + $0x38] sm:$0xff]
        %v331 = vld [vmem:[%s322 + $0x40] sm:$0xff]
        %v332 = vld [vmem:[%s322 + $0x48] sm:$0xff]
        %v333 = vld [vmem:[%s322 + $0x50] sm:$0xff]
        %v334 = vld [vmem:[%s322 + $0x58] sm:$0xff]
        %v335 = vld [vmem:[%s322 + $0x60] sm:$0xff]
        %v336 = vld [vmem:[%s322 + $0x68] sm:$0xff]
        %v337 = vld [vmem:[%s322 + $0x70] sm:$0xff]
        %v338 = vld [vmem:[%s322 + $0x78] sm:$0xff]
        %s339 = scalar_lea.vmem %s2, 1
        %v340 = vld [vmem:[%s339] sm:$0x1]
        %v342 = vlaneseq
        %v343 = vshrl.u32 %v342, 7
        %v344 = vsub.s32 0, %v343
        %v345 = vrot.slane %v340, %v344
        %347 = vmatprep.subr.mxu0 0.0
        %348 = vmatpush1.msra.mxu0 %v323
        %349 = vmatprep.subr.mxu0 0.0
        %350 = vmatpush1.msra.mxu0 %v324
        %351 = vmatprep.subr.mxu0 0.0
        %352 = vmatpush1.msra.mxu0 %v325
        %353 = vmatprep.subr.mxu0 0.0
        %354 = vmatpush1.msra.mxu0 %v326
        %355 = vmatprep.subr.mxu0 0.0
        %356 = vmatpush1.msra.mxu0 %v327
        %357 = vmatprep.subr.mxu0 0.0
        %358 = vmatpush1.msra.mxu0 %v328
        %359 = vmatprep.subr.mxu0 0.0
        %360 = vmatpush1.msra.mxu0 %v329
        %361 = vmatprep.subr.mxu0 0.0
        %362 = vmatpush1.msra.mxu0 %v330
        %363 = vmatprep.subr.mxu0 0.0
        %364 = vmatpush1.msra.mxu0 %v331
        %365 = vmatprep.subr.mxu0 0.0
        %366 = vmatpush1.msra.mxu0 %v332
        %367 = vmatprep.subr.mxu0 0.0
        %368 = vmatpush1.msra.mxu0 %v333
        %369 = vmatprep.subr.mxu0 0.0
        %370 = vmatpush1.msra.mxu0 %v334
        %371 = vmatprep.subr.mxu0 0.0
        %372 = vmatpush1.msra.mxu0 %v335
        %373 = vmatprep.subr.mxu0 0.0
        %374 = vmatpush1.msra.mxu0 %v336
        %375 = vmatprep.subr.mxu0 0.0
        %376 = vmatpush1.msra.mxu0 %v337
        %377 = vmatprep.subr.mxu0 0.0
        %378 = vmatpush1.msra.mxu0 %v338
        %379 = vmatprep.subr.mxu0 0.0
        %380 = vmatpush1.msra.mxu0 0.0
        %381 = vmatprep.subr.mxu0 0.0
        %382 = vmatpush1.msra.mxu0 0.0
        %383 = vmatprep.subr.mxu0 0.0
        %384 = vmatpush1.msra.mxu0 0.0
        %385 = vmatprep.subr.mxu0 0.0
        %386 = vmatpush1.msra.mxu0 0.0
        %387 = vmatprep.subr.mxu0 0.0
        %388 = vmatpush1.msra.mxu0 0.0
        %389 = vmatprep.subr.mxu0 0.0
        %390 = vmatpush1.msra.mxu0 0.0
        %391 = vmatprep.subr.mxu0 0.0
        %392 = vmatpush1.msra.mxu0 0.0
        %393 = vmatprep.subr.mxu0 0.0
        %394 = vmatpush1.msra.mxu0 0.0
        %395 = vmatprep.subr.mxu0 0.0
        %396 = vmatpush1.msra.mxu0 0.0
        %397 = vmatprep.subr.mxu0 0.0
        %398 = vmatpush1.msra.mxu0 0.0
        %399 = vmatprep.subr.mxu0 0.0
        %400 = vmatpush1.msra.mxu0 0.0
        %401 = vmatprep.subr.mxu0 0.0
        %402 = vmatpush1.msra.mxu0 0.0
        %403 = vmatprep.subr.mxu0 0.0
        %404 = vmatpush1.msra.mxu0 0.0
        %405 = vmatprep.subr.mxu0 0.0
        %406 = vmatpush1.msra.mxu0 0.0
        %407 = vmatprep.subr.mxu0 0.0
        %408 = vmatpush1.msra.mxu0 0.0
        %409 = vmatprep.subr.mxu0 0.0
        %410 = vmatpush1.msra.mxu0 0.0
        %411 = vmatprep.mubr.f32.mxu0 0.0
        %412 = vmatmul.mubr.f32.gmra.mrb[0].mxu0 %v318
        %v413 = vpop.f32.mrb[0].mxu0
        %v414 = vadd.f32 %v345, %v413
        %v415 = vpop.f32.mrb[0].mxu0
        %416 = vmatprep.mubr.f32.mxu0 0.0
        %417 = vmatmul.mubr.f32.gmra.mrb[0].mxu0 %v319
        %v418 = vpop.f32.mrb[0].mxu0
        %v419 = vadd.f32 %v345, %v418
        %v420 = vpop.f32.mrb[0].mxu0
        %421 = vmatprep.mubr.f32.mxu0 0.0
        %422 = vmatmul.mubr.f32.gmra.mrb[0].mxu0 %v320
        %v423 = vpop.f32.mrb[0].mxu0
        %v424 = vadd.f32 %v345, %v423
        %v425 = vpop.f32.mrb[0].mxu0
        %426 = vmatprep.mubr.f32.mxu0 0.0
        %427 = vmatmul.mubr.f32.gmra.mrb[0].mxu0 %v321
        %v428 = vpop.f32.mrb[0].mxu0
        %v429 = vadd.f32 %v345, %v428
        %v430 = vpop.f32.mrb[0].mxu0
        %431 = vdwg.mxu0
        %v432 = vmax.f32 %v414, 0.0
        %v433 = vmax.f32 %v419, 0.0
        %v434 = vmax.f32 %v424, 0.0
        %v435 = vmax.f32 %v429, 0.0
        %s436 = scalar_lea.vmem [#allocation5], 256
        %v437 = vld [vmem:[%s436] sm:$0xff]
        %v438 = vld [vmem:[%s436 + $0x8] sm:$0xff]
        %v439 = vld [vmem:[%s436 + $0x10] sm:$0xff]
        %v440 = vld [vmem:[%s436 + $0x18] sm:$0xff]
        %v441 = vld [vmem:[%s436 + $0x20] sm:$0xff]
        %v442 = vld [vmem:[%s436 + $0x28] sm:$0xff]
        %v443 = vld [vmem:[%s436 + $0x30] sm:$0xff]
        %v444 = vld [vmem:[%s436 + $0x38] sm:$0xff]
        %v445 = vld [vmem:[%s436 + $0x40] sm:$0xff]
        %v446 = vld [vmem:[%s436 + $0x48] sm:$0xff]
        %v447 = vld [vmem:[%s436 + $0x50] sm:$0xff]
        %v448 = vld [vmem:[%s436 + $0x58] sm:$0xff]
        %v449 = vld [vmem:[%s436 + $0x60] sm:$0xff]
        %v450 = vld [vmem:[%s436 + $0x68] sm:$0xff]
        %v451 = vld [vmem:[%s436 + $0x70] sm:$0xff]
        %v452 = vld [vmem:[%s436 + $0x78] sm:$0xff]
        %s453 = scalar_lea.vmem %s2, 2
        %v454 = vld [vmem:[%s453] sm:$0x1]
        %v456 = vlaneseq
        %v457 = vshrl.u32 %v456, 7
        %v458 = vsub.s32 0, %v457
        %v459 = vrot.slane %v454, %v458
        %461 = vmatprep.subr.mxu0 0.0
        %462 = vmatpush1.msra.mxu0 %v437
        %463 = vmatprep.subr.mxu0 0.0
        %464 = vmatpush1.msra.mxu0 %v438
        %465 = vmatprep.subr.mxu0 0.0
        %466 = vmatpush1.msra.mxu0 %v439
        %467 = vmatprep.subr.mxu0 0.0
        %468 = vmatpush1.msra.mxu0 %v440
        %469 = vmatprep.subr.mxu0 0.0
        %470 = vmatpush1.msra.mxu0 %v441
        %471 = vmatprep.subr.mxu0 0.0
        %472 = vmatpush1.msra.mxu0 %v442
        %473 = vmatprep.subr.mxu0 0.0
        %474 = vmatpush1.msra.mxu0 %v443
        %475 = vmatprep.subr.mxu0 0.0
        %476 = vmatpush1.msra.mxu0 %v444
        %477 = vmatprep.subr.mxu0 0.0
        %478 = vmatpush1.msra.mxu0 %v445
        %479 = vmatprep.subr.mxu0 0.0
        %480 = vmatpush1.msra.mxu0 %v446
        %481 = vmatprep.subr.mxu0 0.0
        %482 = vmatpush1.msra.mxu0 %v447
        %483 = vmatprep.subr.mxu0 0.0
        %484 = vmatpush1.msra.mxu0 %v448
        %485 = vmatprep.subr.mxu0 0.0
        %486 = vmatpush1.msra.mxu0 %v449
        %487 = vmatprep.subr.mxu0 0.0
        %488 = vmatpush1.msra.mxu0 %v450
        %489 = vmatprep.subr.mxu0 0.0
        %490 = vmatpush1.msra.mxu0 %v451
        %491 = vmatprep.subr.mxu0 0.0
        %492 = vmatpush1.msra.mxu0 %v452
        %493 = vmatprep.subr.mxu0 0.0
        %494 = vmatpush1.msra.mxu0 0.0
        %495 = vmatprep.subr.mxu0 0.0
        %496 = vmatpush1.msra.mxu0 0.0
        %497 = vmatprep.subr.mxu0 0.0
        %498 = vmatpush1.msra.mxu0 0.0
        %499 = vmatprep.subr.mxu0 0.0
        %500 = vmatpush1.msra.mxu0 0.0
        %501 = vmatprep.subr.mxu0 0.0
        %502 = vmatpush1.msra.mxu0 0.0
        %503 = vmatprep.subr.mxu0 0.0
        %504 = vmatpush1.msra.mxu0 0.0
        %505 = vmatprep.subr.mxu0 0.0
        %506 = vmatpush1.msra.mxu0 0.0
        %507 = vmatprep.subr.mxu0 0.0
        %508 = vmatpush1.msra.mxu0 0.0
        %509 = vmatprep.subr.mxu0 0.0
        %510 = vmatpush1.msra.mxu0 0.0
        %511 = vmatprep.subr.mxu0 0.0
        %512 = vmatpush1.msra.mxu0 0.0
        %513 = vmatprep.subr.mxu0 0.0
        %514 = vmatpush1.msra.mxu0 0.0
        %515 = vmatprep.subr.mxu0 0.0
        %516 = vmatpush1.msra.mxu0 0.0
        %517 = vmatprep.subr.mxu0 0.0
        %518 = vmatpush1.msra.mxu0 0.0
        %519 = vmatprep.subr.mxu0 0.0
        %520 = vmatpush1.msra.mxu0 0.0
        %521 = vmatprep.subr.mxu0 0.0
        %522 = vmatpush1.msra.mxu0 0.0
        %523 = vmatprep.subr.mxu0 0.0
        %524 = vmatpush1.msra.mxu0 0.0
        %525 = vmatprep.mubr.f32.mxu0 0.0
        %526 = vmatmul.mubr.f32.gmra.mrb[0].mxu0 %v432
        %v527 = vpop.f32.mrb[0].mxu0
        %v528 = vadd.f32 %v459, %v527
        %v529 = vpop.f32.mrb[0].mxu0
        %530 = vmatprep.mubr.f32.mxu0 0.0
        %531 = vmatmul.mubr.f32.gmra.mrb[0].mxu0 %v433
        %v532 = vpop.f32.mrb[0].mxu0
        %v533 = vadd.f32 %v459, %v532
        %v534 = vpop.f32.mrb[0].mxu0
        %535 = vmatprep.mubr.f32.mxu0 0.0
        %536 = vmatmul.mubr.f32.gmra.mrb[0].mxu0 %v434
        %v537 = vpop.f32.mrb[0].mxu0
        %v538 = vadd.f32 %v459, %v537
        %v539 = vpop.f32.mrb[0].mxu0
        %540 = vmatprep.mubr.f32.mxu0 0.0
        %541 = vmatmul.mubr.f32.gmra.mrb[0].mxu0 %v435
        %v542 = vpop.f32.mrb[0].mxu0
        %v543 = vadd.f32 %v459, %v542
        %v544 = vpop.f32.mrb[0].mxu0
        %545 = vdwg.mxu0
        %v546 = vlaneseq
        %v547 = vand.u32 %v546, 127
        %vm548 = vcmp.lt.s32.totalorder %v547, 10
        %v549 = vsel %vm548, %v528, -inf
        %v550 = vsel %vm548, %v533, -inf
        %v551 = vsel %vm548, %v538, -inf
        %v552 = vsel %vm548, %v543, -inf
        %553 = vmax.xlane.f32.xlu0 %v549
        %v554 = vpop.xlane.xlu0 %553
        %555 = vmax.xlane.f32.xlu0 %v550
        %v556 = vpop.xlane.xlu0 %555
        %557 = vmax.xlane.f32.xlu0 %v551
        %v558 = vpop.xlane.xlu0 %557
        %559 = vmax.xlane.f32.xlu0 %v552
        %v560 = vpop.xlane.xlu0 %559
        %v561 = vsub.f32 %v549, %v554
        %v562 = vsub.f32 %v550, %v556
        %v563 = vsub.f32 %v551, %v558
        %v564 = vsub.f32 %v552, %v560
        %v565 = vmul.f32 %v561, 1.442695
        %v566 = vpow.pop %v565
        %v567 = vmul.f32 %v562, 1.442695
        %v568 = vpow.pop %v567
        %v569 = vmul.f32 %v563, 1.442695
        %v570 = vpow.pop %v569
        %v571 = vmul.f32 %v564, 1.442695
        %v572 = vpow.pop %v571
        %573 = vadd.xlane.f32.xlu0 %v566
        %v574 = vpop.xlane.xlu0 %573
        %575 = vadd.xlane.f32.xlu0 %v568
        %v576 = vpop.xlane.xlu0 %575
        %577 = vadd.xlane.f32.xlu0 %v570
        %v578 = vpop.xlane.xlu0 %577
        %579 = vadd.xlane.f32.xlu0 %v572
        %v580 = vpop.xlane.xlu0 %579
        %v581 = vlog2.pop %v574
        %v582 = vmul.f32 %v581, 0.6931472
        %v583 = vlog2.pop %v576
        %v584 = vmul.f32 %v583, 0.6931472
        %v585 = vlog2.pop %v578
        %v586 = vmul.f32 %v585, 0.6931472
        %v587 = vlog2.pop %v580
        %v588 = vmul.f32 %v587, 0.6931472
        %v589 = vsub.f32 %v561, %v582
        %v590 = vsub.f32 %v562, %v584
        %v591 = vsub.f32 %v563, %v586
        %v592 = vsub.f32 %v564, %v588
        %593 = vst [vmem:[%s203] sm:$0xff] %v589
        %594 = vst [vmem:[%s203 + $0x8] sm:$0xff] %v590
        %595 = vst [vmem:[%s203 + $0x10] sm:$0xff] %v591
        %596 = vst [vmem:[%s203 + $0x18] sm:$0xff] %v592
        %s597 = sand.u32 %s97, 1
        %s598 = scalar_lea.sflag [#allocation4], %s597
        %s599 = sand.u32 %s97, 1
        %s600 = smul.addr %s599, 32
        %s601 = scalar_lea.vmem [#allocation7], %s600
        // Predicated region
        $region41: #{tpu_custom_call.1} parent=31 // pred_check
          %p602 = pneg %p107
        $region42: #{tpu_custom_call.1} parent=31 // pred_check_branch
          %604 = sbr.rel (%p602) target = $region44
        $region43: #{tpu_custom_call.1} parent=31 // pred_region
          %s605 = smul.u32 4, %s21
          %s607 = ssub.s32 512, 512
          %608 = vsyncadd %s598, %s607
          %s609 = smul.addr %s605, 128
          %s610 = scalar_lea.hbm %s3, %s609
          %s611 = sshll.u32 %s601, 4
          %s612 = int_to_ptr.vmem [resolvable:$true] %s611
          %617 = dma.vmem_to_hbm [thread:$0]  %s612, 512, %s610, %s598, 128, 128, 8
        $region44: #{tpu_custom_call.1} parent=31 // pred_fallthru
          _
      $region32: #{tpu_custom_call.1} parent=5 // pred_fallthru
        _
      %p618 = scmp.le.s32.totalorder 2, %s16
      // Predicated region
      $region45: #{tpu_custom_call.1} parent=5 // pred_check
        %p619 = pneg %p618
      $region46: #{tpu_custom_call.1} parent=5 // pred_check_branch
        %621 = sbr.rel (%p619) target = $region48
      $region47: #{tpu_custom_call.1} parent=5 // pred_region
        %s622 = ssub.s32 %s16, 2
        // Predicated region
        $region49: #{tpu_custom_call.1} parent=47 // pred_check
          %p623 = pneg %p113
        $region50: #{tpu_custom_call.1} parent=47 // pred_check_branch
          %625 = sbr.rel (%p623) target = $region52
        $region51: #{tpu_custom_call.1} parent=47 // pred_region
          %s626 = sand.u32 %s98, 1
          %s627 = scalar_lea.sflag [#allocation4], %s626
          %s628 = sand.u32 %s98, 1
          %s629 = smul.addr %s628, 32
          %s630 = scalar_lea.vmem [#allocation7], %s629
          %631 = dma.done %s627, 512
        $region52: #{tpu_custom_call.1} parent=47 // pred_fallthru
          _
      $region48: #{tpu_custom_call.1} parent=5 // pred_fallthru
        _
    $region6: #{tpu_custom_call.1} parent=1 // loop_footer
      %s20 = sadd.s32 1, %s16
    $region7: #{tpu_custom_call.1} parent=1 // loop_footer_branch
      %15 = sbr.rel target = $region3
    $region8: #{tpu_custom_call.1} parent=1 // loop_exit
      _
    %632 = vsyncpa [#allocation3], 1
    %s633 = scalar_lea.sflag [#allocation3], 1
    %634 = vsyncpa %s633, 1
    %635 = vsyncpa [#allocation6], 1
    %636 = vsyncpa [#allocation4], 1
    %s637 = scalar_lea.sflag [#allocation4], 1
    %638 = vsyncpa %s637, 1

</llo_original>
